<compile_context>
chip_gen: v7x
topology: tpu7x:2x2x1
jax: 0.10.0
libtpu: 0.0.40
codegen_flags: <defaults>
</compile_context>

<pallas_src>
import functools

import jax
import jax.numpy as jnp
from jax.experimental import pallas as pl
from jax.experimental.pallas import tpu as pltpu


# ---------------------------------------------------------------------------
# Fused Bottleneck kernel: (1x1 CBS [+ 1x1 projection CBS]) -> 3x3 CBS -> +res
# ---------------------------------------------------------------------------
def _silu(y):
    # y * sigmoid(y), with the divide on the EUP approx-reciprocal path.
    return y * pl.reciprocal(1.0 + jnp.exp(-y), approx=True)


def _bottleneck_kernel(x_ref, wc_ref, bc_ref, w2_ref, b2_ref, o_ref, y1p_ref,
                       *, H, WCo, has_proj):
    Bb = x_ref.shape[0]
    WCin = x_ref.shape[2]

    x = x_ref[...].reshape(Bb * H, WCin)            # (M, W*Cin), M = B_blk*H
    xb = x if x.dtype == jnp.bfloat16 else x.astype(jnp.bfloat16)

    # --- fused 1x1 branches: one MXU matmul over [blockdiag(w1) | blockdiag(wp)]
    y = jnp.dot(xb, wc_ref[...], preferred_element_type=jnp.float32)
    y = _silu(y + bc_ref[...])                      # folded-BN bias + SiLU (f32)

    y1 = y[:, :WCo]                                 # cbs1 output   (lane-aligned slice)
    if has_proj:
        res = y[:, WCo:]                            # SiLU(BN(proj(x)))
    else:
        res = x.astype(jnp.float32)                 # identity residual (Cin == Cout)

    # --- stage y1 into an H-padded bf16 scratch; zero only the 2 halo rows ---
    # (halo rows are re-zeroed each step: negligible cost, and keeps the kernel
    #  correct regardless of how grid steps are sharded across TensorCores)
    zero_row = jnp.zeros((Bb, 1, WCo), jnp.bfloat16)
    y1p_ref[:, pl.ds(0, 1), :] = zero_row
    y1p_ref[:, pl.ds(H + 1, 1), :] = zero_row
    y1p_ref[:, pl.ds(1, H), :] = y1.reshape(Bb, H, WCo).astype(jnp.bfloat16)

    # --- 3x3 conv: kw taps + SAME W-boundary are folded into banded weights,
    #     so only 3 matmuls (one per kh row shift), K = N = W*Cout. -----------
    def tap(kh):
        patch = y1p_ref[:, pl.ds(kh, H), :].reshape(Bb * H, WCo)
        return jnp.dot(patch, w2_ref[kh], preferred_element_type=jnp.float32)

    acc = tap(0)                                    # init from first tap (no zeros+add)
    acc = acc + tap(1)
    acc = acc + tap(2)

    y2 = _silu(acc + b2_ref[...])                   # folded-BN bias + SiLU (f32)

    o_ref[...] = (res + y2).reshape(Bb, H, WCo).astype(o_ref.dtype)


# ---------------------------------------------------------------------------
# Glue: BN folding, W-folded (block-diag / banded) weight construction
# ---------------------------------------------------------------------------
def fold_bn(gamma, beta, mean, var, eps=1e-5):
    scale = gamma / jnp.sqrt(var + eps)
    bias = beta - mean * scale
    return scale, bias


def _prep_kernel_params(params, W):
    """Fold BN into weights; fold the spatial W axis into the matmul dims."""
    s1, b1 = fold_bn(*params["bn1"])
    w1s = params["w1"] * s1[None, :]                      # (Cin, Cout)
    s2, b2 = fold_bn(*params["bn2"])
    w2s = params["w2"] * s2[None, None, None, :]          # (3, 3, Cout, Cout)
    Cout = w1s.shape[1]

    eye_w = jnp.eye(W, dtype=w1s.dtype)
    wc = jnp.kron(eye_w, w1s)                             # (W*Cin, W*Cout) block-diag
    bc = jnp.tile(b1, W)                                  # (W*Cout,)

    has_proj = "wp" in params
    if has_proj:
        sp, bp = fold_bn(*params["bnp"])
        wps = params["wp"] * sp[None, :]
        wc = jnp.concatenate([wc, jnp.kron(eye_w, wps)], axis=1)   # (W*Cin, 2*W*Cout)
        bc = jnp.concatenate([bc, jnp.tile(bp, W)], axis=0)

    # Banded 3x3 weights: W2band[kh][w_in*C+ci, w_out*C+co] = w2[kh, w_in-w_out+1, ci, co]
    # (|w_in - w_out| <= 1, zeros elsewhere -> SAME boundary in W handled for free).
    bands = []
    for kh in range(3):
        band = jnp.zeros((W * Cout, W * Cout), w2s.dtype)
        for kw in range(3):
            shift = jnp.eye(W, k=-(kw - 1), dtype=w2s.dtype)
            band = band + jnp.kron(shift, w2s[kh, kw])
        bands.append(band)
    w2b = jnp.stack(bands, axis=0)                        # (3, W*Cout, W*Cout)
    b2t = jnp.tile(b2, W)                                 # (W*Cout,)

    return (wc.astype(jnp.bfloat16),
            bc.reshape(1, -1).astype(jnp.float32),
            w2b.astype(jnp.bfloat16),
            b2t.reshape(1, -1).astype(jnp.float32),
            has_proj, Cout)


def _const_spec(shape):
    ndim = len(shape)
    # TODO(synk): for large-Cout configs single-buffer these constant weight
    # blocks (pipeline_mode=pl.Buffered(1)); negligible at these weight sizes.
    return pl.BlockSpec(shape, lambda n, _nd=ndim: (0,) * _nd)


def _pick_b_blk(N, H, W, cin, cout, has_proj, budget_bytes=24 << 20):
    """Images per grid step: fill the MXU (M ~ 256 rows) but keep >= 4 grid
    steps when the batch allows (pipelining / v7x megacore), within VMEM."""
    wci, wco = W * cin, W * cout

    def footprint(b):
        x_blk = 2 * b * H * wci * 4             # double-buffered input block
        o_blk = 2 * b * H * wco * 4             # double-buffered output block
        scratch = b * (H + 2) * wco * 2         # bf16 padded-y1 scratch
        temps = 4 * b * H * wco * (2 if has_proj else 1) * 4
        return x_blk + o_blk + scratch + temps

    cap = max(1, 256 // H)
    cap = min(cap, N // 4) if N >= 4 else 1
    best = 1
    for b in range(1, N + 1):
        if N % b == 0 and b <= cap and footprint(b) <= budget_bytes:
            best = b
    return best


def bottleneck_forward(x_nchw, params):
    N, Cin, H, W = x_nchw.shape
    wc, bc, w2b, b2, has_proj, Cout = _prep_kernel_params(params, W)
    if not has_proj and Cin != Cout:
        raise ValueError("identity residual requires in_channels == out_channels")

    WCin, WCo = W * Cin, W * Cout
    # NCHW -> lane-dense (N, H, W*Cin). TODO(synk): keep this layout end-to-end
    # in a real network; the transposes here are PyTorch-interface glue.
    x_flat = jnp.transpose(x_nchw, (0, 2, 3, 1)).reshape(N, H, WCin)

    b_blk = _pick_b_blk(N, H, W, Cin, Cout, has_proj)
    grid = (N // b_blk,)

    kernel = functools.partial(_bottleneck_kernel, H=H, WCo=WCo, has_proj=has_proj)

    out_flat = pl.pallas_call(
        kernel,
        out_shape=jax.ShapeDtypeStruct((N, H, WCo), jnp.float32),
        grid_spec=pltpu.PrefetchScalarGridSpec(
            num_scalar_prefetch=0,
            grid=grid,
            in_specs=[
                pl.BlockSpec((b_blk, H, WCin), lambda n: (n, 0, 0)),   # x block
                _const_spec(wc.shape),                                 # [w1 | wp] block-diag
                _const_spec(bc.shape),                                 # [b1 | bp]
                _const_spec(w2b.shape),                                # banded 3x3 taps
                _const_spec(b2.shape),                                 # b2
            ],
            out_specs=pl.BlockSpec((b_blk, H, WCo), lambda n: (n, 0, 0)),
            scratch_shapes=[pltpu.VMEM((b_blk, H + 2, WCo), jnp.bfloat16)],
        ),
        compiler_params=pltpu.CompilerParams(
            dimension_semantics=("parallel",),
            vmem_limit_bytes=48 * 1024 * 1024,   # safe on v7x (64 MiB) and v5e/v6e
        ),
    )(x_flat, wc, bc, w2b, b2)

    out_nhwc = out_flat.reshape(N, H, W, Cout)
    return jnp.transpose(out_nhwc, (0, 3, 1, 2))  # back to NCHW


# ---------------------------------------------------------------------------
# Pure-JAX reference (lax.conv) for verification
# ---------------------------------------------------------------------------
def _ref_cbs(x_nchw, w_oihw, bn, padding):
    y = jax.lax.conv_general_dilated(
        x_nchw, w_oihw, window_strides=(1, 1), padding=padding,
        dimension_numbers=("NCHW", "OIHW", "NCHW"))
    scale, bias = fold_bn(*bn)
    y = y * scale[None, :, None, None] + bias[None, :, None, None]
    return y * jax.nn.sigmoid(y)


def bottleneck_reference(x_nchw, torch_params):
    y = _ref_cbs(x_nchw, torch_params["w1_oihw"], torch_params["bn1"], "VALID")
    y = _ref_cbs(y, torch_params["w2_oihw"], torch_params["bn2"], "SAME")
    if "wp_oihw" in torch_params:
        r = _ref_cbs(x_nchw, torch_params["wp_oihw"], torch_params["bnp"], "VALID")
    else:
        r = x_nchw
    return r + y


# ---------------------------------------------------------------------------
# Deterministic parameter construction
# ---------------------------------------------------------------------------
def make_params(key, cin, cout, k=3):
    keys = jax.random.split(key, 12)

    def bn_params(k0, k1, k2, k3, c):
        gamma = jax.random.uniform(k0, (c,), jnp.float32, 0.5, 1.5)
        beta = 0.1 * jax.random.normal(k1, (c,), jnp.float32)
        mean = 0.1 * jax.random.normal(k2, (c,), jnp.float32)
        var = jax.random.uniform(k3, (c,), jnp.float32, 0.5, 1.5)
        return (gamma, beta, mean, var)

    # conv weights in PyTorch OIHW layout
    w1_oihw = 0.1 * jax.random.normal(keys[0], (cout, cin, 1, 1), jnp.float32)
    w2_oihw = 0.1 * jax.random.normal(keys[1], (cout, cout, k, k), jnp.float32)
    torch_params = {
        "w1_oihw": w1_oihw,
        "w2_oihw": w2_oihw,
        "bn1": bn_params(*keys[2:6], cout),
        "bn2": bn_params(*keys[6:10], cout),
    }
    if cin != cout:
        wp_oihw = 0.1 * jax.random.normal(keys[10], (cout, cin, 1, 1), jnp.float32)
        torch_params["wp_oihw"] = wp_oihw
        torch_params["bnp"] = bn_params(*jax.random.split(keys[11], 4), cout)

    # kernel-layout params: 1x1 -> (Cin, Cout); 3x3 -> (kh, kw, Cin2, Cout)
    params = {
        "w1": jnp.transpose(w1_oihw[:, :, 0, 0], (1, 0)),
        "w2": jnp.transpose(w2_oihw, (2, 3, 1, 0)),
        "bn1": torch_params["bn1"],
        "bn2": torch_params["bn2"],
    }
    if cin != cout:
        params["wp"] = jnp.transpose(torch_params["wp_oihw"][:, :, 0, 0], (1, 0))
        params["bnp"] = torch_params["bnp"]
    return params, torch_params


if __name__ == "__main__":
    key = jax.random.PRNGKey(0)
    kx, kp, kx2, kp2 = jax.random.split(key, 4)
    fwd = jax.jit(bottleneck_forward)

    # Case 1: in_channels != out_channels -> projection branch active.
    N, Cin, Cout, H, W = 2, 4, 8, 16, 16
    x = jax.random.normal(kx, (N, Cin, H, W), jnp.float32)
    params, torch_params = make_params(kp, Cin, Cout, k=3)
    out = jax.block_until_ready(fwd(x, params))
    ref = jax.block_until_ready(bottleneck_reference(x, torch_params))
    assert out.shape == (N, Cout, H, W)
    err = jnp.max(jnp.abs(out - ref))
    assert err < 2e-2, f"proj case: max err {err}"

    # Case 2: in_channels == out_channels -> identity residual.
    x2 = jax.random.normal(kx2, (N, Cout, H, W), jnp.float32)
    params2, torch_params2 = make_params(kp2, Cout, Cout, k=3)
    out2 = jax.block_until_ready(fwd(x2, params2))
    ref2 = jax.block_until_ready(bottleneck_reference(x2, torch_params2))
    assert out2.shape == (N, Cout, H, W)
    err2 = jnp.max(jnp.abs(out2 - ref2))
    assert err2 < 2e-2, f"identity case: max err {err2}"

    print("KERNEL_OK")
</pallas_src>

<mosaic_0001>
module attributes {stable_mosaic.version = 11 : i64} {
  func.func @_bottleneck_kernel(%arg0: i32, %arg1: memref<1x16x64xf32, #tpu.memory_space<vmem>>, %arg2: memref<64x256xbf16, #tpu.memory_space<vmem>>, %arg3: memref<1x256xf32, #tpu.memory_space<vmem>>, %arg4: memref<3x128x128xbf16, #tpu.memory_space<vmem>>, %arg5: memref<1x128xf32, #tpu.memory_space<vmem>>, %arg6: memref<1x16x128xf32, #tpu.memory_space<vmem>>, %arg7: memref<1x18x128xbf16, #tpu.memory_space<vmem>>) attributes {dimension_semantics = [#tpu.dimension_semantics<parallel>], iteration_bounds = array<i64: 2>, scalar_prefetch = 0 : i64, scratch_operands = 1 : i64, tpu.core_type = #tpu.core_type<tc>, window_params = [{transform_indices = @transform_0, window_bounds = array<i64: 1, 16, 64>}, {pipeline_mode = #tpu.pipeline_mode<synchronous>, transform_indices = @transform_1, window_bounds = array<i64: 64, 256>}, {pipeline_mode = #tpu.pipeline_mode<synchronous>, transform_indices = @transform_2, window_bounds = array<i64: 1, 256>}, {pipeline_mode = #tpu.pipeline_mode<synchronous>, transform_indices = @transform_3, window_bounds = array<i64: 3, 128, 128>}, {pipeline_mode = #tpu.pipeline_mode<synchronous>, transform_indices = @transform_4, window_bounds = array<i64: 1, 128>}, {transform_indices = @transform_5, window_bounds = array<i64: 1, 16, 128>}]} {
    %c0 = arith.constant 0 : index
    %c0_0 = arith.constant 0 : index
    %c0_1 = arith.constant 0 : index
    %0 = vector.load %arg1[%c0, %c0_0, %c0_1] : memref<1x16x64xf32, #tpu.memory_space<vmem>>, vector<1x16x64xf32>
    %1 = vector.shape_cast %0 : vector<1x16x64xf32> to vector<16x64xf32>
    %2 = arith.truncf %1 : vector<16x64xf32> to vector<16x64xbf16>
    %c0_2 = arith.constant 0 : index
    %c0_3 = arith.constant 0 : index
    %3 = vector.load %arg2[%c0_2, %c0_3] : memref<64x256xbf16, #tpu.memory_space<vmem>>, vector<64x256xbf16>
    %cst = arith.constant dense<0.000000e+00> : vector<16x256xf32>
    %4 = tpu.matmul %2, %3, %cst {dimension_numbers = #tpu.dot_dimension_numbers<[1], [0], [0], [1], [0, 0, 1, 1], [], []>} : vector<16x64xbf16>, vector<64x256xbf16>, vector<16x256xf32> -> vector<16x256xf32>
    %c0_4 = arith.constant 0 : index
    %c0_5 = arith.constant 0 : index
    %5 = vector.load %arg3[%c0_4, %c0_5] : memref<1x256xf32, #tpu.memory_space<vmem>>, vector<1x256xf32>
    %6 = vector.broadcast %5 : vector<1x256xf32> to vector<16x256xf32>
    %7 = arith.addf %4, %6 : vector<16x256xf32>
    %cst_6 = arith.constant 0.000000e+00 : f32
    %8 = vector.broadcast %cst_6 : f32 to vector<16x256xf32>
    %9 = arith.subf %8, %7 : vector<16x256xf32>
    %10 = math.exp %9 : vector<16x256xf32>
    %cst_7 = arith.constant 1.000000e+00 : f32
    %11 = vector.broadcast %cst_7 : f32 to vector<16x256xf32>
    %12 = arith.addf %11, %10 : vector<16x256xf32>
    %13 = tpu.reciprocal %12 {approx = true} : vector<16x256xf32> -> vector<16x256xf32>
    %14 = arith.mulf %7, %13 : vector<16x256xf32>
    %15 = vector.extract_strided_slice %14 {offsets = [0, 0], sizes = [16, 128], strides = [1, 1]} : vector<16x256xf32> to vector<16x128xf32>
    %16 = vector.extract_strided_slice %14 {offsets = [0, 128], sizes = [16, 128], strides = [1, 1]} : vector<16x256xf32> to vector<16x128xf32>
    %cst_8 = arith.constant 0.000000e+00 : bf16
    %17 = vector.broadcast %cst_8 : bf16 to vector<1x1x128xbf16>
    %c0_9 = arith.constant 0 : index
    %c0_10 = arith.constant 0 : index
    %c0_11 = arith.constant 0 : index
    %18 = vector.load %arg7[%c0_9, %c0_10, %c0_11] : memref<1x18x128xbf16, #tpu.memory_space<vmem>>, vector<1x1x128xbf16>
    tpu.vector_store %arg7[%c0_9, %c0_10, %c0_11], %17 {strides = array<i32>} : memref<1x18x128xbf16, #tpu.memory_space<vmem>>, vector<1x1x128xbf16>,
    %c0_12 = arith.constant 0 : index
    %c17 = arith.constant 17 : index
    %c0_13 = arith.constant 0 : index
    %19 = vector.load %arg7[%c0_12, %c17, %c0_13] : memref<1x18x128xbf16, #tpu.memory_space<vmem>>, vector<1x1x128xbf16>
    tpu.vector_store %arg7[%c0_12, %c17, %c0_13], %17 {strides = array<i32>} : memref<1x18x128xbf16, #tpu.memory_space<vmem>>, vector<1x1x128xbf16>,
    %20 = vector.shape_cast %15 : vector<16x128xf32> to vector<1x16x128xf32>
    %21 = arith.truncf %20 : vector<1x16x128xf32> to vector<1x16x128xbf16>
    %c0_14 = arith.constant 0 : index
    %c1 = arith.constant 1 : index
    %c0_15 = arith.constant 0 : index
    %22 = vector.load %arg7[%c0_14, %c1, %c0_15] : memref<1x18x128xbf16, #tpu.memory_space<vmem>>, vector<1x16x128xbf16>
    tpu.vector_store %arg7[%c0_14, %c1, %c0_15], %21 {strides = array<i32>} : memref<1x18x128xbf16, #tpu.memory_space<vmem>>, vector<1x16x128xbf16>,
    %c0_16 = arith.constant 0 : index
    %c0_17 = arith.constant 0 : index
    %c0_18 = arith.constant 0 : index
    %23 = vector.load %arg7[%c0_16, %c0_17, %c0_18] : memref<1x18x128xbf16, #tpu.memory_space<vmem>>, vector<1x16x128xbf16>
    %24 = vector.shape_cast %23 : vector<1x16x128xbf16> to vector<16x128xbf16>
    %c0_19 = arith.constant 0 : index
    %c0_20 = arith.constant 0 : index
    %c0_21 = arith.constant 0 : index
    %25 = vector.load %arg4[%c0_19, %c0_20, %c0_21] : memref<3x128x128xbf16, #tpu.memory_space<vmem>>, vector<1x128x128xbf16>
    %26 = vector.shape_cast %25 : vector<1x128x128xbf16> to vector<128x128xbf16>
    %cst_22 = arith.constant dense<0.000000e+00> : vector<16x128xf32>
    %27 = tpu.matmul %24, %26, %cst_22 {dimension_numbers = #tpu.dot_dimension_numbers<[1], [0], [0], [1], [0, 0, 1, 1], [], []>} : vector<16x128xbf16>, vector<128x128xbf16>, vector<16x128xf32> -> vector<16x128xf32>
    %c0_23 = arith.constant 0 : index
    %c1_24 = arith.constant 1 : index
    %c0_25 = arith.constant 0 : index
    %28 = vector.load %arg7[%c0_23, %c1_24, %c0_25] : memref<1x18x128xbf16, #tpu.memory_space<vmem>>, vector<1x16x128xbf16>
    %29 = vector.shape_cast %28 : vector<1x16x128xbf16> to vector<16x128xbf16>
    %c1_26 = arith.constant 1 : index
    %c0_27 = arith.constant 0 : index
    %c0_28 = arith.constant 0 : index
    %30 = vector.load %arg4[%c1_26, %c0_27, %c0_28] : memref<3x128x128xbf16, #tpu.memory_space<vmem>>, vector<1x128x128xbf16>
    %31 = vector.shape_cast %30 : vector<1x128x128xbf16> to vector<128x128xbf16>
    %cst_29 = arith.constant dense<0.000000e+00> : vector<16x128xf32>
    %32 = tpu.matmul %29, %31, %cst_29 {dimension_numbers = #tpu.dot_dimension_numbers<[1], [0], [0], [1], [0, 0, 1, 1], [], []>} : vector<16x128xbf16>, vector<128x128xbf16>, vector<16x128xf32> -> vector<16x128xf32>
    %33 = arith.addf %27, %32 : vector<16x128xf32>
    %c0_30 = arith.constant 0 : index
    %c2 = arith.constant 2 : index
    %c0_31 = arith.constant 0 : index
    %34 = vector.load %arg7[%c0_30, %c2, %c0_31] : memref<1x18x128xbf16, #tpu.memory_space<vmem>>, vector<1x16x128xbf16>
    %35 = vector.shape_cast %34 : vector<1x16x128xbf16> to vector<16x128xbf16>
    %c2_32 = arith.constant 2 : index
    %c0_33 = arith.constant 0 : index
    %c0_34 = arith.constant 0 : index
    %36 = vector.load %arg4[%c2_32, %c0_33, %c0_34] : memref<3x128x128xbf16, #tpu.memory_space<vmem>>, vector<1x128x128xbf16>
    %37 = vector.shape_cast %36 : vector<1x128x128xbf16> to vector<128x128xbf16>
    %cst_35 = arith.constant dense<0.000000e+00> : vector<16x128xf32>
    %38 = tpu.matmul %35, %37, %cst_35 {dimension_numbers = #tpu.dot_dimension_numbers<[1], [0], [0], [1], [0, 0, 1, 1], [], []>} : vector<16x128xbf16>, vector<128x128xbf16>, vector<16x128xf32> -> vector<16x128xf32>
    %39 = arith.addf %33, %38 : vector<16x128xf32>
    %c0_36 = arith.constant 0 : index
    %c0_37 = arith.constant 0 : index
    %40 = vector.load %arg5[%c0_36, %c0_37] : memref<1x128xf32, #tpu.memory_space<vmem>>, vector<1x128xf32>
    %41 = vector.broadcast %40 : vector<1x128xf32> to vector<16x128xf32>
    %42 = arith.addf %39, %41 : vector<16x128xf32>
    %cst_38 = arith.constant 0.000000e+00 : f32
    %43 = vector.broadcast %cst_38 : f32 to vector<16x128xf32>
    %44 = arith.subf %43, %42 : vector<16x128xf32>
    %45 = math.exp %44 : vector<16x128xf32>
    %cst_39 = arith.constant 1.000000e+00 : f32
    %46 = vector.broadcast %cst_39 : f32 to vector<16x128xf32>
    %47 = arith.addf %46, %45 : vector<16x128xf32>
    %48 = tpu.reciprocal %47 {approx = true} : vector<16x128xf32> -> vector<16x128xf32>
    %49 = arith.mulf %42, %48 : vector<16x128xf32>
    %50 = arith.addf %16, %49 : vector<16x128xf32>
    %51 = vector.shape_cast %50 : vector<16x128xf32> to vector<1x16x128xf32>
    %c0_40 = arith.constant 0 : index
    %c0_41 = arith.constant 0 : index
    %c0_42 = arith.constant 0 : index
    %52 = vector.load %arg6[%c0_40, %c0_41, %c0_42] : memref<1x16x128xf32, #tpu.memory_space<vmem>>, vector<1x16x128xf32>
    tpu.vector_store %arg6[%c0_40, %c0_41, %c0_42], %51 {strides = array<i32>} : memref<1x16x128xf32, #tpu.memory_space<vmem>>, vector<1x16x128xf32>,
    return
  }
  func.func @transform_0(%arg0: i32) -> (i32, i32, i32) {
    %c0_i32 = arith.constant 0 : i32
    %c0_i32_0 = arith.constant 0 : i32
    %c0_i32_1 = arith.constant 0 : i32
    return %arg0, %c0_i32, %c0_i32_0 : i32, i32, i32
  }
  func.func @transform_1(%arg0: i32) -> (i32, i32) {
    %c0_i32 = arith.constant 0 : i32
    %c0_i32_0 = arith.constant 0 : i32
    %c0_i32_1 = arith.constant 0 : i32
    return %c0_i32, %c0_i32_0 : i32, i32
  }
  func.func @transform_2(%arg0: i32) -> (i32, i32) {
    %c0_i32 = arith.constant 0 : i32
    %c0_i32_0 = arith.constant 0 : i32
    %c0_i32_1 = arith.constant 0 : i32
    return %c0_i32, %c0_i32_0 : i32, i32
  }
  func.func @transform_3(%arg0: i32) -> (i32, i32, i32) {
    %c0_i32 = arith.constant 0 : i32
    %c0_i32_0 = arith.constant 0 : i32
    %c0_i32_1 = arith.constant 0 : i32
    %c0_i32_2 = arith.constant 0 : i32
    return %c0_i32, %c0_i32_0, %c0_i32_1 : i32, i32, i32
  }
  func.func @transform_4(%arg0: i32) -> (i32, i32) {
    %c0_i32 = arith.constant 0 : i32
    %c0_i32_0 = arith.constant 0 : i32
    %c0_i32_1 = arith.constant 0 : i32
    return %c0_i32, %c0_i32_0 : i32, i32
  }
  func.func @transform_5(%arg0: i32) -> (i32, i32, i32) {
    %c0_i32 = arith.constant 0 : i32
    %c0_i32_0 = arith.constant 0 : i32
    %c0_i32_1 = arith.constant 0 : i32
    return %arg0, %c0_i32, %c0_i32_0 : i32, i32, i32
  }
}

</mosaic_0001>

<llo_original>
// kernel: tile.18
$region0: #{tile.18}
  #allocation0 [shape = 's32[1]{0}', space=sflag, size = 0x4, scoped, tag = 'scoped memory for tile.18']
  %s0 = inlined_call_operand.vmem [shape: f32[8], index: 0, kind: input, shape index: {}]
  %s1 = inlined_call_operand.vmem [shape: f32[16,8], index: 1, kind: output, shape index: {}]
  // Predicated region
  $region2: #{tile.18} parent=0 // pred_check
    _
  $region3: #{tile.18} parent=0 // pred_check_branch
    %3 = sbr.rel (0) target = $region5
  $region4: #{tile.18} parent=0 // pred_region
    _
  $region5: #{tile.18} parent=0 // pred_fallthru
    _
  %v4 = vld [vmem:[%s0] ss:$0 sm:$0xff]
  %5 = vst [vmem:[%s1] sm:$0xff] %v4
  %s6 = scalar_lea.vmem %s1, 8
  %7 = vst [vmem:[%s6] sm:$0xff] %v4

// kernel: tile.19
$region0: #{tile.19}
  %s0 = inlined_call_operand.vmem [shape: f32[16,8], index: 0, kind: input, shape index: {}]
  %s1 = inlined_call_operand.vmem [shape: f32[128], index: 1, kind: output, shape index: {}]
  $region1: #{tile.19} parent=0
    #allocation0 [shape = 'u8[4096]{0}', space=vmem, size = 0x1000, scoped, tag = 'scoped mem for output reshape']
    %v2 = vld [vmem:[%s0] sm:$0x1]
    %vm3 = vcmask 64512
    %4 = vst.msk [vmem:[#allocation0] sm:$0x1] %vm3, %v2
    %s5 = scalar_lea.vmem %s0, 15
    %v6 = vld [vmem:[%s5] sm:$0x1]
    %7 = vrot.lane.b32.xlu0 %v6, 120
    %v8 = vpop.permute.xlu0 %7
    %vm9 = vcmask 1048512
    %10 = vst.msk [vmem:[#allocation0] sm:$0x1] %vm9, %v8
    %s11 = scalar_lea.vmem %s0, 14
    %v12 = vld [vmem:[%s11] sm:$0x1]
    %13 = vrot.lane.b32.xlu0 %v12, 112
    %v14 = vpop.permute.xlu0 %13
    %vm15 = vcmask 982912
    %16 = vst.msk [vmem:[#allocation0] sm:$0x1] %vm15, %v14
    %s17 = scalar_lea.vmem %s0, 13
    %v18 = vld [vmem:[%s17] sm:$0x1]
    %19 = vrot.lane.b32.xlu0 %v18, 104
    %v20 = vpop.permute.xlu0 %19
    %vm21 = vcmask 917312
    %22 = vst.msk [vmem:[#allocation0] sm:$0x1] %vm21, %v20
    %s23 = scalar_lea.vmem %s0, 12
    %v24 = vld [vmem:[%s23] sm:$0x1]
    %25 = vrot.lane.b32.xlu0 %v24, 96
    %v26 = vpop.permute.xlu0 %25
    %vm27 = vcmask 851712
    %28 = vst.msk [vmem:[#allocation0] sm:$0x1] %vm27, %v26
    %s29 = scalar_lea.vmem %s0, 11
    %v30 = vld [vmem:[%s29] sm:$0x1]
    %31 = vrot.lane.b32.xlu0 %v30, 88
    %v32 = vpop.permute.xlu0 %31
    %vm33 = vcmask 786112
    %34 = vst.msk [vmem:[#allocation0] sm:$0x1] %vm33, %v32
    %s35 = scalar_lea.vmem %s0, 10
    %v36 = vld [vmem:[%s35] sm:$0x1]
    %37 = vrot.lane.b32.xlu0 %v36, 80
    %v38 = vpop.permute.xlu0 %37
    %vm39 = vcmask 720512
    %40 = vst.msk [vmem:[#allocation0] sm:$0x1] %vm39, %v38
    %s41 = scalar_lea.vmem %s0, 9
    %v42 = vld [vmem:[%s41] sm:$0x1]
    %43 = vrot.lane.b32.xlu0 %v42, 72
    %v44 = vpop.permute.xlu0 %43
    %vm45 = vcmask 654912
    %46 = vst.msk [vmem:[#allocation0] sm:$0x1] %vm45, %v44
    %s47 = scalar_lea.vmem %s0, 8
    %v48 = vld [vmem:[%s47] sm:$0x1]
    %49 = vrot.lane.b32.xlu0 %v48, 64
    %v50 = vpop.permute.xlu0 %49
    %vm51 = vcmask 589312
    %52 = vst.msk [vmem:[#allocation0] sm:$0x1] %vm51, %v50
    %s53 = scalar_lea.vmem %s0, 7
    %v54 = vld [vmem:[%s53] sm:$0x1]
    %55 = vrot.lane.b32.xlu0 %v54, 56
    %v56 = vpop.permute.xlu0 %55
    %vm57 = vcmask 523712
    %58 = vst.msk [vmem:[#allocation0] sm:$0x1] %vm57, %v56
    %s59 = scalar_lea.vmem %s0, 6
    %v60 = vld [vmem:[%s59] sm:$0x1]
    %61 = vrot.lane.b32.xlu0 %v60, 48
    %v62 = vpop.permute.xlu0 %61
    %vm63 = vcmask 458112
    %64 = vst.msk [vmem:[#allocation0] sm:$0x1] %vm63, %v62
    %s65 = scalar_lea.vmem %s0, 5
    %v66 = vld [vmem:[%s65] sm:$0x1]
    %67 = vrot.lane.b32.xlu0 %v66, 40
    %v68 = vpop.permute.xlu0 %67
    %vm69 = vcmask 392512
    %70 = vst.msk [vmem:[#allocation0] sm:$0x1] %vm69, %v68
    %s71 = scalar_lea.vmem %s0, 4
    %v72 = vld [vmem:[%s71] sm:$0x1]
    %73 = vrot.lane.b32.xlu0 %v72, 32
    %v74 = vpop.permute.xlu0 %73
    %vm75 = vcmask 326912
    %76 = vst.msk [vmem:[#allocation0] sm:$0x1] %vm75, %v74
    %s77 = scalar_lea.vmem %s0, 3
    %v78 = vld [vmem:[%s77] sm:$0x1]
    %79 = vrot.lane.b32.xlu0 %v78, 24
    %v80 = vpop.permute.xlu0 %79
    %vm81 = vcmask 261312
    %82 = vst.msk [vmem:[#allocation0] sm:$0x1] %vm81, %v80
    %s83 = scalar_lea.vmem %s0, 2
    %v84 = vld [vmem:[%s83] sm:$0x1]
    %85 = vrot.lane.b32.xlu0 %v84, 16
    %v86 = vpop.permute.xlu0 %85
    %vm87 = vcmask 195712
    %88 = vst.msk [vmem:[#allocation0] sm:$0x1] %vm87, %v86
    %s89 = scalar_lea.vmem %s0, 1
    %v90 = vld [vmem:[%s89] sm:$0x1]
    %91 = vrot.lane.b32.xlu0 %v90, 8
    %v92 = vpop.permute.xlu0 %91
    %vm93 = vcmask 130112
    %94 = vst.msk [vmem:[#allocation0] sm:$0x1] %vm93, %v92
    %s96 = sshllo.u32 0, 1
    %v98 = vld [vmem:[#allocation0] sm:%s96]
    %s99 = sshllo.u32 0, 1
    %100 = vst [vmem:[%s1] sm:%s99] %v98

// kernel: tile.29
$region0: #{tile.29}
  %s0 = inlined_call_operand.vmem [shape: f32[16,8], index: 0, kind: input, shape index: {}]
  %s1 = inlined_call_operand.vmem [shape: f32[1,128], index: 1, kind: output, shape index: {}]
  $region1: #{tile.29} parent=0
    #allocation0 [shape = 'u8[4096]{0}', space=vmem, size = 0x1000, scoped, tag = 'scoped mem for output reshape']
    %v2 = vld [vmem:[%s0] sm:$0x1]
    %vm3 = vcmask 64512
    %4 = vst.msk [vmem:[#allocation0] sm:$0x1] %vm3, %v2
    %s5 = scalar_lea.vmem %s0, 15
    %v6 = vld [vmem:[%s5] sm:$0x1]
    %7 = vrot.lane.b32.xlu0 %v6, 120
    %v8 = vpop.permute.xlu0 %7
    %vm9 = vcmask 1048512
    %10 = vst.msk [vmem:[#allocation0] sm:$0x1] %vm9, %v8
    %s11 = scalar_lea.vmem %s0, 14
    %v12 = vld [vmem:[%s11] sm:$0x1]
    %13 = vrot.lane.b32.xlu0 %v12, 112
    %v14 = vpop.permute.xlu0 %13
    %vm15 = vcmask 982912
    %16 = vst.msk [vmem:[#allocation0] sm:$0x1] %vm15, %v14
    %s17 = scalar_lea.vmem %s0, 13
    %v18 = vld [vmem:[%s17] sm:$0x1]
    %19 = vrot.lane.b32.xlu0 %v18, 104
    %v20 = vpop.permute.xlu0 %19
    %vm21 = vcmask 917312
    %22 = vst.msk [vmem:[#allocation0] sm:$0x1] %vm21, %v20
    %s23 = scalar_lea.vmem %s0, 12
    %v24 = vld [vmem:[%s23] sm:$0x1]
    %25 = vrot.lane.b32.xlu0 %v24, 96
    %v26 = vpop.permute.xlu0 %25
    %vm27 = vcmask 851712
    %28 = vst.msk [vmem:[#allocation0] sm:$0x1] %vm27, %v26
    %s29 = scalar_lea.vmem %s0, 11
    %v30 = vld [vmem:[%s29] sm:$0x1]
    %31 = vrot.lane.b32.xlu0 %v30, 88
    %v32 = vpop.permute.xlu0 %31
    %vm33 = vcmask 786112
    %34 = vst.msk [vmem:[#allocation0] sm:$0x1] %vm33, %v32
    %s35 = scalar_lea.vmem %s0, 10
    %v36 = vld [vmem:[%s35] sm:$0x1]
    %37 = vrot.lane.b32.xlu0 %v36, 80
    %v38 = vpop.permute.xlu0 %37
    %vm39 = vcmask 720512
    %40 = vst.msk [vmem:[#allocation0] sm:$0x1] %vm39, %v38
    %s41 = scalar_lea.vmem %s0, 9
    %v42 = vld [vmem:[%s41] sm:$0x1]
    %43 = vrot.lane.b32.xlu0 %v42, 72
    %v44 = vpop.permute.xlu0 %43
    %vm45 = vcmask 654912
    %46 = vst.msk [vmem:[#allocation0] sm:$0x1] %vm45, %v44
    %s47 = scalar_lea.vmem %s0, 8
    %v48 = vld [vmem:[%s47] sm:$0x1]
    %49 = vrot.lane.b32.xlu0 %v48, 64
    %v50 = vpop.permute.xlu0 %49
    %vm51 = vcmask 589312
    %52 = vst.msk [vmem:[#allocation0] sm:$0x1] %vm51, %v50
    %s53 = scalar_lea.vmem %s0, 7
    %v54 = vld [vmem:[%s53] sm:$0x1]
    %55 = vrot.lane.b32.xlu0 %v54, 56
    %v56 = vpop.permute.xlu0 %55
    %vm57 = vcmask 523712
    %58 = vst.msk [vmem:[#allocation0] sm:$0x1] %vm57, %v56
    %s59 = scalar_lea.vmem %s0, 6
    %v60 = vld [vmem:[%s59] sm:$0x1]
    %61 = vrot.lane.b32.xlu0 %v60, 48
    %v62 = vpop.permute.xlu0 %61
    %vm63 = vcmask 458112
    %64 = vst.msk [vmem:[#allocation0] sm:$0x1] %vm63, %v62
    %s65 = scalar_lea.vmem %s0, 5
    %v66 = vld [vmem:[%s65] sm:$0x1]
    %67 = vrot.lane.b32.xlu0 %v66, 40
    %v68 = vpop.permute.xlu0 %67
    %vm69 = vcmask 392512
    %70 = vst.msk [vmem:[#allocation0] sm:$0x1] %vm69, %v68
    %s71 = scalar_lea.vmem %s0, 4
    %v72 = vld [vmem:[%s71] sm:$0x1]
    %73 = vrot.lane.b32.xlu0 %v72, 32
    %v74 = vpop.permute.xlu0 %73
    %vm75 = vcmask 326912
    %76 = vst.msk [vmem:[#allocation0] sm:$0x1] %vm75, %v74
    %s77 = scalar_lea.vmem %s0, 3
    %v78 = vld [vmem:[%s77] sm:$0x1]
    %79 = vrot.lane.b32.xlu0 %v78, 24
    %v80 = vpop.permute.xlu0 %79
    %vm81 = vcmask 261312
    %82 = vst.msk [vmem:[#allocation0] sm:$0x1] %vm81, %v80
    %s83 = scalar_lea.vmem %s0, 2
    %v84 = vld [vmem:[%s83] sm:$0x1]
    %85 = vrot.lane.b32.xlu0 %v84, 16
    %v86 = vpop.permute.xlu0 %85
    %vm87 = vcmask 195712
    %88 = vst.msk [vmem:[#allocation0] sm:$0x1] %vm87, %v86
    %s89 = scalar_lea.vmem %s0, 1
    %v90 = vld [vmem:[%s89] sm:$0x1]
    %91 = vrot.lane.b32.xlu0 %v90, 8
    %v92 = vpop.permute.xlu0 %91
    %vm93 = vcmask 130112
    %94 = vst.msk [vmem:[#allocation0] sm:$0x1] %vm93, %v92
    %s96 = sshllo.u32 0, 1
    %v98 = vld [vmem:[#allocation0] sm:%s96]
    %s99 = sshllo.u32 0, 1
    %100 = vst [vmem:[%s1] sm:%s99] %v98

// kernel: bottleneck_forward.1
$region0: #{bottleneck_forward.1}
  #allocation0 [shape = 'u32[]', space=smem, size = 0x4, offset = 0x4, fixed_abs, tag = 'smem constant byte address 0x4 - core index']
  #allocation1 [shape = 'u32[144,128]{1,0:T(1,128)}', space=vmem, size = 0x12000, scoped, tag = 'internal scratch']
  #allocation2 [shape = 'bf16[1,18,128]{2,1,0:T(8,128)(2,1)}', space=vmem, size = 0x1800, scoped, tag = 'scratch operand']
  %s0 = inlined_call_operand.vmem [shape: f32[2,16,64], index: 0, kind: input, shape index: {}]
  %s1 = inlined_call_operand.vmem [shape: bf16[64,256], index: 1, kind: input, shape index: {}]
  %s2 = inlined_call_operand.vmem [shape: f32[1,256], index: 2, kind: input, shape index: {}]
  %s3 = inlined_call_operand.vmem [shape: bf16[3,128,128], index: 3, kind: input, shape index: {}]
  %s4 = inlined_call_operand.vmem [shape: f32[1,128], index: 4, kind: input, shape index: {}]
  %s5 = inlined_call_operand.vmem [shape: f32[2,16,128], index: 5, kind: output, shape index: {}]
  %s6 = sld [smem:[#allocation0]]
  $region53: #{bottleneck_forward.1} parent=0
    _
  %s8 = ssub.s32 1, %s6
  %s9 = scalar_select 0, %s8, %s6
  loop: start=0, step=1, limit=4
  $region2: #{bottleneck_forward.1} parent=0 // loop_pre_header
    _
  $region3: #{bottleneck_forward.1} parent=0 // loop_header
    %s11 = sphi 0, %s15
    %p12 = scmp.ge.s32.totalorder %s11, 4
    %s21 = sphi 0, %s23
    %s24 = sphi 0, %s21
    %s25 = sphi 0, %s24
    %s41 = sphi 0, %s25
    %s45 = sphi 0, %s45
    %s47 = sphi 0, %s45
    %s48 = sphi 0, %s47
    %s62 = sphi 0, %s48
    %s66 = sphi 0, %s66
    %s68 = sphi 0, %s66
    %s69 = sphi 0, %s68
    %s83 = sphi 0, %s69
    %s87 = sphi 0, %s87
    %s89 = sphi 0, %s87
    %s90 = sphi 0, %s89
    %s104 = sphi 0, %s90
    %s108 = sphi 0, %s108
    %s110 = sphi 0, %s108
    %s111 = sphi 0, %s110
    %s125 = sphi 0, %s111
    %s131 = sphi 0, %s133
    %s134 = sphi 0, %s131
    %s135 = sphi 0, %s134
    %s151 = sphi 0, %s135
  $region4: #{bottleneck_forward.1} parent=0 // loop_header_branch
    %14 = sbr.rel (%p12) target = $region8
  $region5: #{bottleneck_forward.1} parent=0 // loop_body
    %s16 = ssub.s32 %s11, 1
    %s17 = ssub.s32 %s11, 2
    %s18 = sadd.s32 %s11, 1
    %s19 = ssub.s32 %s11, %s18
    %p20 = scmp.eq.s32.totalorder %s19, 0
    %s22 = sadd.s32 %s21, 1
    %s23 = scalar_select %p20, %s21, %s22
    %p26 = pneg %p20
    %p27 = scmp.eq.s32.totalorder %s11, 1
    %p28 = por %p26, %p27
    %p29 = scmp.ne.s32.totalorder %s21, %s24
    %p30 = scmp.eq.s32.totalorder %s11, 0
    %p31 = por %p29, %p30
    %p32 = scmp.ne.s32.totalorder %s21, %s24
    %p33 = scmp.eq.s32.totalorder %s16, 1
    %p34 = por %p32, %p33
    %p35 = scmp.ne.s32.totalorder %s24, %s25
    %p36 = scmp.eq.s32.totalorder %s16, 0
    %p37 = por %p35, %p36
    %p38 = scmp.ne.s32.totalorder %s24, %s25
    %p39 = scmp.eq.s32.totalorder %s17, 1
    %p40 = por %p38, %p39
    %p42 = scmp.ne.s32.totalorder %s25, %s41
    %p43 = scmp.eq.s32.totalorder %s17, 0
    %p44 = por %p42, %p43
    %s46 = sadd.s32 %s45, 1
    %p49 = scmp.eq.s32.totalorder %s11, 1
    %p50 = scmp.ne.s32.totalorder %s45, %s47
    %p51 = scmp.eq.s32.totalorder %s11, 0
    %p52 = por %p50, %p51
    %p53 = scmp.ne.s32.totalorder %s45, %s47
    %p54 = scmp.eq.s32.totalorder %s16, 1
    %p55 = por %p53, %p54
    %p56 = scmp.ne.s32.totalorder %s47, %s48
    %p57 = scmp.eq.s32.totalorder %s16, 0
    %p58 = por %p56, %p57
    %p59 = scmp.ne.s32.totalorder %s47, %s48
    %p60 = scmp.eq.s32.totalorder %s17, 1
    %p61 = por %p59, %p60
    %p63 = scmp.ne.s32.totalorder %s48, %s62
    %p64 = scmp.eq.s32.totalorder %s17, 0
    %p65 = por %p63, %p64
    %s67 = sadd.s32 %s66, 1
    %p70 = scmp.eq.s32.totalorder %s11, 1
    %p71 = scmp.ne.s32.totalorder %s66, %s68
    %p72 = scmp.eq.s32.totalorder %s11, 0
    %p73 = por %p71, %p72
    %p74 = scmp.ne.s32.totalorder %s66, %s68
    %p75 = scmp.eq.s32.totalorder %s16, 1
    %p76 = por %p74, %p75
    %p77 = scmp.ne.s32.totalorder %s68, %s69
    %p78 = scmp.eq.s32.totalorder %s16, 0
    %p79 = por %p77, %p78
    %p80 = scmp.ne.s32.totalorder %s68, %s69
    %p81 = scmp.eq.s32.totalorder %s17, 1
    %p82 = por %p80, %p81
    %p84 = scmp.ne.s32.totalorder %s69, %s83
    %p85 = scmp.eq.s32.totalorder %s17, 0
    %p86 = por %p84, %p85
    %s88 = sadd.s32 %s87, 1
    %p91 = scmp.eq.s32.totalorder %s11, 1
    %p92 = scmp.ne.s32.totalorder %s87, %s89
    %p93 = scmp.eq.s32.totalorder %s11, 0
    %p94 = por %p92, %p93
    %p95 = scmp.ne.s32.totalorder %s87, %s89
    %p96 = scmp.eq.s32.totalorder %s16, 1
    %p97 = por %p95, %p96
    %p98 = scmp.ne.s32.totalorder %s89, %s90
    %p99 = scmp.eq.s32.totalorder %s16, 0
    %p100 = por %p98, %p99
    %p101 = scmp.ne.s32.totalorder %s89, %s90
    %p102 = scmp.eq.s32.totalorder %s17, 1
    %p103 = por %p101, %p102
    %p105 = scmp.ne.s32.totalorder %s90, %s104
    %p106 = scmp.eq.s32.totalorder %s17, 0
    %p107 = por %p105, %p106
    %s109 = sadd.s32 %s108, 1
    %p112 = scmp.eq.s32.totalorder %s11, 1
    %p113 = scmp.ne.s32.totalorder %s108, %s110
    %p114 = scmp.eq.s32.totalorder %s11, 0
    %p115 = por %p113, %p114
    %p116 = scmp.ne.s32.totalorder %s108, %s110
    %p117 = scmp.eq.s32.totalorder %s16, 1
    %p118 = por %p116, %p117
    %p119 = scmp.ne.s32.totalorder %s110, %s111
    %p120 = scmp.eq.s32.totalorder %s16, 0
    %p121 = por %p119, %p120
    %p122 = scmp.ne.s32.totalorder %s110, %s111
    %p123 = scmp.eq.s32.totalorder %s17, 1
    %p124 = por %p122, %p123
    %p126 = scmp.ne.s32.totalorder %s111, %s125
    %p127 = scmp.eq.s32.totalorder %s17, 0
    %p128 = por %p126, %p127
    %s129 = ssub.s32 %s11, %s18
    %p130 = scmp.eq.s32.totalorder %s129, 0
    %s132 = sadd.s32 %s131, 1
    %s133 = scalar_select %p130, %s131, %s132
    %p136 = pneg %p130
    %p137 = scmp.eq.s32.totalorder %s11, 1
    %p138 = por %p136, %p137
    %p139 = scmp.ne.s32.totalorder %s131, %s134
    %p140 = scmp.eq.s32.totalorder %s11, 0
    %p141 = por %p139, %p140
    %p142 = scmp.ne.s32.totalorder %s131, %s134
    %p143 = scmp.eq.s32.totalorder %s16, 1
    %p144 = por %p142, %p143
    %p145 = scmp.ne.s32.totalorder %s134, %s135
    %p146 = scmp.eq.s32.totalorder %s16, 0
    %p147 = por %p145, %p146
    %p148 = scmp.ne.s32.totalorder %s134, %s135
    %p149 = scmp.eq.s32.totalorder %s17, 1
    %p150 = por %p148, %p149
    %p152 = scmp.ne.s32.totalorder %s135, %s151
    %p153 = scmp.eq.s32.totalorder %s17, 0
    %p154 = por %p152, %p153
    %p155 = scmp.le.s32.totalorder 1, %s11
    %p156 = scmp.lt.s32.totalorder %s11, 3
    %p157 = pnand %p155, %p156
    %p158 = pneg %p157
    // Predicated region
    $region9: #{bottleneck_forward.1} parent=5 // pred_check
      _
    $region10: #{bottleneck_forward.1} parent=5 // pred_check_branch
      %160 = sbr.rel (%p157) target = $region12
    $region11: #{bottleneck_forward.1} parent=5 // pred_region
      %s161 = ssub.s32 %s11, 1
      // Predicated region
      $region13: #{bottleneck_forward.1} parent=11 // pred_check
        %p162 = pneg %p58
      $region14: #{bottleneck_forward.1} parent=11 // pred_check_branch
        %164 = sbr.rel (%p162) target = $region16
      $region15: #{bottleneck_forward.1} parent=11 // pred_region
        _
      $region16: #{bottleneck_forward.1} parent=11 // pred_fallthru
        _
      // Predicated region
      $region17: #{bottleneck_forward.1} parent=11 // pred_check
        %p165 = pneg %p79
      $region18: #{bottleneck_forward.1} parent=11 // pred_check_branch
        %167 = sbr.rel (%p165) target = $region20
      $region19: #{bottleneck_forward.1} parent=11 // pred_region
        _
      $region20: #{bottleneck_forward.1} parent=11 // pred_fallthru
        _
      // Predicated region
      $region21: #{bottleneck_forward.1} parent=11 // pred_check
        %p168 = pneg %p100
      $region22: #{bottleneck_forward.1} parent=11 // pred_check_branch
        %170 = sbr.rel (%p168) target = $region24
      $region23: #{bottleneck_forward.1} parent=11 // pred_region
        _
      $region24: #{bottleneck_forward.1} parent=11 // pred_fallthru
        _
      // Predicated region
      $region25: #{bottleneck_forward.1} parent=11 // pred_check
        %p171 = pneg %p121
      $region26: #{bottleneck_forward.1} parent=11 // pred_check_branch
        %173 = sbr.rel (%p171) target = $region28
      $region27: #{bottleneck_forward.1} parent=11 // pred_region
        _
      $region28: #{bottleneck_forward.1} parent=11 // pred_fallthru
        _
    $region12: #{bottleneck_forward.1} parent=5 // pred_fallthru
      _
    %p174 = scmp.lt.s32.totalorder %s11, 2
    // Predicated region
    $region29: #{bottleneck_forward.1} parent=5 // pred_check
      %p175 = pneg %p174
    $region30: #{bottleneck_forward.1} parent=5 // pred_check_branch
      %177 = sbr.rel (%p175) target = $region32
    $region31: #{bottleneck_forward.1} parent=5 // pred_region
      // Predicated region
      $region33: #{bottleneck_forward.1} parent=31 // pred_check
        %p178 = pneg %p31
      $region34: #{bottleneck_forward.1} parent=31 // pred_check_branch
        %180 = sbr.rel (%p178) target = $region36
      $region35: #{bottleneck_forward.1} parent=31 // pred_region
        %p181 = scmp.lt.s32.totalorder %s11, 1
        %s182 = scalar_select %p181, %s11, 1
        %s183 = smul.addr %s182, 2
        %s184 = smul.addr %s183, 8
        %s185 = scalar_lea.vmem %s0, %s184
      $region36: #{bottleneck_forward.1} parent=31 // pred_fallthru
        _
    $region32: #{bottleneck_forward.1} parent=5 // pred_fallthru
      _
    %p186 = scmp.le.s32.totalorder 1, %s11
    %p187 = scmp.lt.s32.totalorder %s11, 3
    %p188 = pnand %p186, %p187
    %p189 = pneg %p188
    // Predicated region
    $region37: #{bottleneck_forward.1} parent=5 // pred_check
      _
    $region38: #{bottleneck_forward.1} parent=5 // pred_check_branch
      %191 = sbr.rel (%p188) target = $region40
    $region39: #{bottleneck_forward.1} parent=5 // pred_region
      %s192 = ssub.s32 %s11, 1
      %p193 = scmp.lt.s32.totalorder %s16, 1
      %s194 = scalar_select %p193, %s16, 1
      %s195 = smul.addr %s194, 2
      %s196 = smul.addr %s195, 8
      %s197 = scalar_lea.vmem %s0, %s196
      %p198 = pneg %p37
      %p199 = pneg %p34
      %p200 = pneg %p58
      %p201 = pneg %p55
      %p202 = pneg %p79
      %p203 = pneg %p76
      %p204 = pneg %p100
      %p205 = pneg %p97
      %p206 = pneg %p121
      %p207 = pneg %p118
      %p208 = pneg %p147
      %p209 = pneg %p144
      %p210 = scmp.lt.s32.totalorder %s16, 1
      %s211 = scalar_select %p210, %s16, 1
      %s212 = smul.addr %s211, 2
      %s213 = smul.addr %s212, 8
      %s214 = scalar_lea.vmem %s5, %s213
      %p215 = scmp.lt.s32.totalorder %s16, 1
      %s216 = scalar_select %p215, %s16, 1
      %s217 = smul.addr %s216, 2
      %s218 = smul.addr %s217, 8
      %s219 = scalar_lea.vmem %s0, %s218
      %p220 = scmp.lt.s32.totalorder %s16, 1
      %s221 = scalar_select %p220, %s16, 1
      %s222 = smul.addr %s221, 2
      %s223 = smul.addr %s222, 8
      %s224 = scalar_lea.vmem %s5, %s223
      %v226 = vld [vmem:[%s219] sm:$0xff]
      %v227 = vld [vmem:[%s219 + $0x8] sm:$0xff]
      %v228 = vpack.c.bf16 %v227, %v226
      %v229 = vld [vmem:[%s1] sm:$0xff]
      %v230 = vld [vmem:[%s1 + $0x8] sm:$0xff]
      %v231 = vld [vmem:[%s1 + $0x10] sm:$0xff]
      %v232 = vld [vmem:[%s1 + $0x18] sm:$0xff]
      %v233 = vld [vmem:[%s1 + $0x20] sm:$0xff]
      %v234 = vld [vmem:[%s1 + $0x28] sm:$0xff]
      %v235 = vld [vmem:[%s1 + $0x30] sm:$0xff]
      %v236 = vld [vmem:[%s1 + $0x38] sm:$0xff]
      %v237 = vld [vmem:[%s2] sm:$0x3]
      %v239 = vlaneseq
      %v240 = vshrl.u32 %v239, 7
      %v241 = vsub.s32 0, %v240
      %v242 = vrot.slane %v237, %v241
      %v243 = vlaneseq
      %v244 = vshrl.u32 %v243, 7
      %v245 = vsub.s32 1, %v244
      %v246 = vrot.slane %v237, %v245
      %v257 = vunpack.c.l.b16 %v229
      %v258 = vunpack.c.h.b16 %v229
      %v259 = vunpack.c.l.b16 %v230
      %v260 = vunpack.c.h.b16 %v230
      %v261 = vunpack.c.l.b16 %v231
      %v262 = vunpack.c.h.b16 %v231
      %v263 = vunpack.c.l.b16 %v232
      %v264 = vunpack.c.h.b16 %v232
      %v265 = vunpack.c.l.b16 %v233
      %v266 = vunpack.c.h.b16 %v233
      %v267 = vunpack.c.l.b16 %v234
      %v268 = vunpack.c.h.b16 %v234
      %v269 = vunpack.c.l.b16 %v235
      %v270 = vunpack.c.h.b16 %v235
      %v271 = vunpack.c.l.b16 %v236
      %v272 = vunpack.c.h.b16 %v236
      %v273 = vpack.c.b16 %v259, %v257
      %v274 = vpack.c.b16 %v260, %v258
      %v275 = vpack.c.b16 %v263, %v261
      %v276 = vpack.c.b16 %v264, %v262
      %v277 = vpack.c.b16 %v267, %v265
      %v278 = vpack.c.b16 %v268, %v266
      %v279 = vpack.c.b16 %v271, %v269
      %v280 = vpack.c.b16 %v272, %v270
      %vm289 = vcmask 523264
      %v291 = vsel %vm289, %v228, 0
      %293 = vmatprep.subr.bf16.mxu0 %v274
      %294 = vmatpush1.bf16.msra.mxu0 %v273
      %295 = vmatprep.subr.bf16.mxu0 %v276
      %296 = vmatpush1.bf16.msra.mxu0 %v275
      %297 = vmatprep.subr.bf16.mxu0 %v278
      %298 = vmatpush1.bf16.msra.mxu0 %v277
      %299 = vmatprep.subr.bf16.mxu0 %v280
      %300 = vmatpush1.bf16.msra.mxu0 %v279
      %301 = vmatprep.subr.bf16.mxu0 0
      %302 = vmatpush1.bf16.msra.mxu0 0
      %303 = vmatprep.subr.bf16.mxu0 0
      %304 = vmatpush1.bf16.msra.mxu0 0
      %305 = vmatprep.subr.bf16.mxu0 0
      %306 = vmatpush1.bf16.msra.mxu0 0
      %307 = vmatprep.subr.bf16.mxu0 0
      %308 = vmatpush1.bf16.msra.mxu0 0
      %309 = vmatprep.subr.bf16.mxu0 0
      %310 = vmatpush1.bf16.msra.mxu0 0
      %311 = vmatprep.subr.bf16.mxu0 0
      %312 = vmatpush1.bf16.msra.mxu0 0
      %313 = vmatprep.subr.bf16.mxu0 0
      %314 = vmatpush1.bf16.msra.mxu0 0
      %315 = vmatprep.subr.bf16.mxu0 0
      %316 = vmatpush1.bf16.msra.mxu0 0
      %317 = vmatprep.subr.bf16.mxu0 0
      %318 = vmatpush1.bf16.msra.mxu0 0
      %319 = vmatprep.subr.bf16.mxu0 0
      %320 = vmatpush1.bf16.msra.mxu0 0
      %321 = vmatprep.subr.bf16.mxu0 0
      %322 = vmatpush1.bf16.msra.mxu0 0
      %323 = vmatprep.subr.bf16.mxu0 0
      %324 = vmatpush1.bf16.msra.mxu0 0
      %325 = vmatprep.mubr.bf16.mxu0 0
      %326 = vmatmul.mubr.bf16.gmra.mrb[0].mxu0 %v291
      %v327 = vpop.f32.mrb[0].mxu0
      %v328 = vadd.f32 %v242, %v327
      %v329 = vpop.f32.mrb[0].mxu0
      %v330 = vadd.f32 %v246, %v329
      %v331 = vpop.f32.mrb[0].mxu0
      %v332 = vadd.f32 %v242, %v331
      %v333 = vpop.f32.mrb[0].mxu0
      %v334 = vadd.f32 %v246, %v333
      %335 = vdwg.mxu0
      %v336 = vsub.f32 0.0, %v328
      %v337 = vsub.f32 0.0, %v330
      %v338 = vsub.f32 0.0, %v332
      %v339 = vsub.f32 0.0, %v334
      %v340 = vmul.f32 %v336, 1.442695
      %v341 = vpow.pop %v340
      %v342 = vmul.f32 %v337, 1.442695
      %v343 = vpow.pop %v342
      %v344 = vmul.f32 %v338, 1.442695
      %v345 = vpow.pop %v344
      %v346 = vmul.f32 %v339, 1.442695
      %v347 = vpow.pop %v346
      %v348 = vadd.f32 %v341, 1.0
      %v349 = vadd.f32 %v343, 1.0
      %v350 = vadd.f32 %v345, 1.0
      %v351 = vadd.f32 %v347, 1.0
      %v352 = vrcp.pop %v348
      %v353 = vrcp.pop %v349
      %v354 = vrcp.pop %v350
      %v355 = vrcp.pop %v351
      %v356 = vmul.f32 %v328, %v352
      %v357 = vmul.f32 %v330, %v353
      %v358 = vmul.f32 %v332, %v354
      %v359 = vmul.f32 %v334, %v355
      %vm360 = vcmask 1040384
      %vm361 = vsmask.f32 256
      %vm362 = vmand %vm360, %vm361
      %v363 = vld [vmem:[#allocation2] sm:$0x1]
      %v364 = vsel %vm362, 0, %v363
      %365 = vst [vmem:[#allocation2] sm:$0x1] %v364
      %vm366 = vsmask.f32 7938
      %vm367 = vmand %vm360, %vm366
      %v368 = vld [vmem:[#allocation2 + $0x8] sm:$0x1]
      %v369 = vsel %vm367, 0, %v368
      %370 = vst [vmem:[#allocation2 + $0x8] sm:$0x1] %v369
      %v371 = vpack.c.bf16 %v358, %v356
      %v373 = vunpack.c.l.b16 %v371
      %v374 = vunpack.c.h.b16 %v371
      %v375 = vpack.c.b16 %v373, %v373
      %v376 = vpack.c.b16 %v374, %v374
      %vm377 = vsmask.f32 4368
      %vm378 = vmor %vm361, %vm377
      %v380 = vshrl.u32 %v375, 16
      %v382 = vrot.slane %v380, 7
      %v383 = vshll.u32 %v375, 16
      %v385 = vor.u32 %v382, %v383
      %v386 = vrot.slane %v382, 4
      %v388 = vshrl.u32 %v376, 16
      %v390 = vrot.slane %v388, 7
      %v391 = vshll.u32 %v376, 16
      %v393 = vor.u32 %v390, %v391
      %v394 = vsel %vm378, %v386, %v393
      %v395 = vrot.slane %v390, 4
      %vm399 = vcmask 1043456
      %vm400 = vmand %vm399, %vm366
      %v401 = vld [vmem:[#allocation2] sm:$0xf]
      %v402 = vsel %vm400, %v385, %v401
      %403 = vst [vmem:[#allocation2] sm:$0xf] %v402
      %404 = vst [vmem:[#allocation2 + $0x4] sm:$0xf] %v394
      %v405 = vld [vmem:[#allocation2 + $0x8] sm:$0x1]
      %v406 = vsel %vm362, %v395, %v405
      %407 = vst [vmem:[#allocation2 + $0x8] sm:$0x1] %v406
      %v408 = vld [vmem:[#allocation2] sm:$0xf]
      %v409 = vld [vmem:[#allocation2 + $0x4] sm:$0xf]
      %v410 = vld [vmem:[%s3] sm:$0xf]
      %v411 = vld [vmem:[%s3 + $0x4] sm:$0xf]
      %v412 = vld [vmem:[%s3 + $0x8] sm:$0xf]
      %v413 = vld [vmem:[%s3 + $0xc] sm:$0xf]
      %v414 = vld [vmem:[%s3 + $0x10] sm:$0xf]
      %v415 = vld [vmem:[%s3 + $0x14] sm:$0xf]
      %v416 = vld [vmem:[%s3 + $0x18] sm:$0xf]
      %v417 = vld [vmem:[%s3 + $0x1c] sm:$0xf]
      %v418 = vld [vmem:[%s3 + $0x20] sm:$0xf]
      %v419 = vld [vmem:[%s3 + $0x24] sm:$0xf]
      %v420 = vld [vmem:[%s3 + $0x28] sm:$0xf]
      %v421 = vld [vmem:[%s3 + $0x2c] sm:$0xf]
      %v422 = vld [vmem:[%s3 + $0x30] sm:$0xf]
      %v423 = vld [vmem:[%s3 + $0x34] sm:$0xf]
      %v424 = vld [vmem:[%s3 + $0x38] sm:$0xf]
      %v425 = vld [vmem:[%s3 + $0x3c] sm:$0xf]
      %v426 = vld [vmem:[#allocation2 + $0x8] sm:$0x1]
      %s427 = scalar_lea.vmem %s3, 64
      %v428 = vld [vmem:[%s427] sm:$0xf]
      %v429 = vld [vmem:[%s427 + $0x4] sm:$0xf]
      %v430 = vld [vmem:[%s427 + $0x8] sm:$0xf]
      %v431 = vld [vmem:[%s427 + $0xc] sm:$0xf]
      %v432 = vld [vmem:[%s427 + $0x10] sm:$0xf]
      %v433 = vld [vmem:[%s427 + $0x14] sm:$0xf]
      %v434 = vld [vmem:[%s427 + $0x18] sm:$0xf]
      %v435 = vld [vmem:[%s427 + $0x1c] sm:$0xf]
      %v436 = vld [vmem:[%s427 + $0x20] sm:$0xf]
      %v437 = vld [vmem:[%s427 + $0x24] sm:$0xf]
      %v438 = vld [vmem:[%s427 + $0x28] sm:$0xf]
      %v439 = vld [vmem:[%s427 + $0x2c] sm:$0xf]
      %v440 = vld [vmem:[%s427 + $0x30] sm:$0xf]
      %v441 = vld [vmem:[%s427 + $0x34] sm:$0xf]
      %v442 = vld [vmem:[%s427 + $0x38] sm:$0xf]
      %v443 = vld [vmem:[%s427 + $0x3c] sm:$0xf]
      %v447 = vunpack.c.l.b16 %v408
      %v448 = vunpack.c.l.b16 %v409
      %v449 = vunpack.c.l.b16 %v426
      %v450 = vpack.c.b16 %v448, %v447
      %v451 = vpack.c.b16 %v449, %v449
      %vm452 = vsmask.f32 7424
      %v454 = vshrl.u32 %v450, 16
      %v456 = vshll.u32 %v450, 16
      %v458 = vrot.slane %v456, 1
      %v459 = vor.u32 %v454, %v458
      %v461 = vshll.u32 %v451, 16
      %v463 = vrot.slane %v461, 1
      %v464 = vsel %vm452, %v459, %v463
      %v482 = vunpack.c.l.b16 %v428
      %v483 = vunpack.c.l.b16 %v429
      %v484 = vunpack.c.l.b16 %v430
      %v485 = vunpack.c.l.b16 %v431
      %v486 = vunpack.c.l.b16 %v432
      %v487 = vunpack.c.l.b16 %v433
      %v488 = vunpack.c.l.b16 %v434
      %v489 = vunpack.c.l.b16 %v435
      %v490 = vunpack.c.l.b16 %v436
      %v491 = vunpack.c.l.b16 %v437
      %v492 = vunpack.c.l.b16 %v438
      %v493 = vunpack.c.l.b16 %v439
      %v494 = vunpack.c.l.b16 %v440
      %v495 = vunpack.c.l.b16 %v441
      %v496 = vunpack.c.l.b16 %v442
      %v497 = vunpack.c.l.b16 %v443
      %v498 = vpack.c.b16 %v483, %v482
      %v499 = vpack.c.b16 %v485, %v484
      %v500 = vpack.c.b16 %v487, %v486
      %v501 = vpack.c.b16 %v489, %v488
      %v502 = vpack.c.b16 %v491, %v490
      %v503 = vpack.c.b16 %v493, %v492
      %v504 = vpack.c.b16 %v495, %v494
      %v505 = vpack.c.b16 %v497, %v496
      %514 = vmatprep.subr.bf16.mxu0 0
      %515 = vmatpush1.bf16.msra.mxu0 %v498
      %516 = vmatprep.subr.bf16.mxu0 0
      %517 = vmatpush1.bf16.msra.mxu0 %v499
      %518 = vmatprep.subr.bf16.mxu0 0
      %519 = vmatpush1.bf16.msra.mxu0 %v500
      %520 = vmatprep.subr.bf16.mxu0 0
      %521 = vmatpush1.bf16.msra.mxu0 %v501
      %522 = vmatprep.subr.bf16.mxu0 0
      %523 = vmatpush1.bf16.msra.mxu0 %v502
      %524 = vmatprep.subr.bf16.mxu0 0
      %525 = vmatpush1.bf16.msra.mxu0 %v503
      %526 = vmatprep.subr.bf16.mxu0 0
      %527 = vmatpush1.bf16.msra.mxu0 %v504
      %528 = vmatprep.subr.bf16.mxu0 0
      %529 = vmatpush1.bf16.msra.mxu0 %v505
      %530 = vmatprep.subr.bf16.mxu0 0
      %531 = vmatpush1.bf16.msra.mxu0 0
      %532 = vmatprep.subr.bf16.mxu0 0
      %533 = vmatpush1.bf16.msra.mxu0 0
      %534 = vmatprep.subr.bf16.mxu0 0
      %535 = vmatpush1.bf16.msra.mxu0 0
      %536 = vmatprep.subr.bf16.mxu0 0
      %537 = vmatpush1.bf16.msra.mxu0 0
      %538 = vmatprep.subr.bf16.mxu0 0
      %539 = vmatpush1.bf16.msra.mxu0 0
      %540 = vmatprep.subr.bf16.mxu0 0
      %541 = vmatpush1.bf16.msra.mxu0 0
      %542 = vmatprep.subr.bf16.mxu0 0
      %543 = vmatpush1.bf16.msra.mxu0 0
      %544 = vmatprep.subr.bf16.mxu0 0
      %545 = vmatpush1.bf16.msra.mxu0 0
      %546 = vmatprep.mubr.bf16.mxu0 0
      %547 = vmatmul.mubr.bf16.gmra.mrb[0].mxu0 %v464
      %v548 = vpop.f32.mrb[0].mxu0
      %v549 = vadd.f32 0.0, %v548
      %v550 = vpop.f32.mrb[0].mxu0
      %v551 = vpop.f32.mrb[0].mxu0
      %v552 = vadd.f32 0.0, %v551
      %v553 = vpop.f32.mrb[0].mxu0
      %554 = vdwg.mxu0
      %v572 = vunpack.c.l.b16 %v410
      %v573 = vunpack.c.l.b16 %v411
      %v574 = vunpack.c.l.b16 %v412
      %v575 = vunpack.c.l.b16 %v413
      %v576 = vunpack.c.l.b16 %v414
      %v577 = vunpack.c.l.b16 %v415
      %v578 = vunpack.c.l.b16 %v416
      %v579 = vunpack.c.l.b16 %v417
      %v580 = vunpack.c.l.b16 %v418
      %v581 = vunpack.c.l.b16 %v419
      %v582 = vunpack.c.l.b16 %v420
      %v583 = vunpack.c.l.b16 %v421
      %v584 = vunpack.c.l.b16 %v422
      %v585 = vunpack.c.l.b16 %v423
      %v586 = vunpack.c.l.b16 %v424
      %v587 = vunpack.c.l.b16 %v425
      %v588 = vpack.c.b16 %v573, %v572
      %v589 = vpack.c.b16 %v575, %v574
      %v590 = vpack.c.b16 %v577, %v576
      %v591 = vpack.c.b16 %v579, %v578
      %v592 = vpack.c.b16 %v581, %v580
      %v593 = vpack.c.b16 %v583, %v582
      %v594 = vpack.c.b16 %v585, %v584
      %v595 = vpack.c.b16 %v587, %v586
      %604 = vmatprep.subr.bf16.mxu0 0
      %605 = vmatpush1.bf16.msra.mxu0 %v588
      %606 = vmatprep.subr.bf16.mxu0 0
      %607 = vmatpush1.bf16.msra.mxu0 %v589
      %608 = vmatprep.subr.bf16.mxu0 0
      %609 = vmatpush1.bf16.msra.mxu0 %v590
      %610 = vmatprep.subr.bf16.mxu0 0
      %611 = vmatpush1.bf16.msra.mxu0 %v591
      %612 = vmatprep.subr.bf16.mxu0 0
      %613 = vmatpush1.bf16.msra.mxu0 %v592
      %614 = vmatprep.subr.bf16.mxu0 0
      %615 = vmatpush1.bf16.msra.mxu0 %v593
      %616 = vmatprep.subr.bf16.mxu0 0
      %617 = vmatpush1.bf16.msra.mxu0 %v594
      %618 = vmatprep.subr.bf16.mxu0 0
      %619 = vmatpush1.bf16.msra.mxu0 %v595
      %620 = vmatprep.subr.bf16.mxu0 0
      %621 = vmatpush1.bf16.msra.mxu0 0
      %622 = vmatprep.subr.bf16.mxu0 0
      %623 = vmatpush1.bf16.msra.mxu0 0
      %624 = vmatprep.subr.bf16.mxu0 0
      %625 = vmatpush1.bf16.msra.mxu0 0
      %626 = vmatprep.subr.bf16.mxu0 0
      %627 = vmatpush1.bf16.msra.mxu0 0
      %628 = vmatprep.subr.bf16.mxu0 0
      %629 = vmatpush1.bf16.msra.mxu0 0
      %630 = vmatprep.subr.bf16.mxu0 0
      %631 = vmatpush1.bf16.msra.mxu0 0
      %632 = vmatprep.subr.bf16.mxu0 0
      %633 = vmatpush1.bf16.msra.mxu0 0
      %634 = vmatprep.subr.bf16.mxu0 0
      %635 = vmatpush1.bf16.msra.mxu0 0
      %636 = vmatprep.mubr.bf16.mxu0 0
      %637 = vmatmul.mubr.bf16.gmra.mrb[0].mxu0 %v450
      %v638 = vpop.f32.mrb[0].mxu0
      %v639 = vadd.f32 %v549, %v638
      %v640 = vpop.f32.mrb[0].mxu0
      %v641 = vpop.f32.mrb[0].mxu0
      %v642 = vadd.f32 %v552, %v641
      %v643 = vpop.f32.mrb[0].mxu0
      %644 = vdwg.mxu0
      %v645 = vld [vmem:[#allocation2] sm:$0xe]
      %s646 = scalar_lea.vmem %s3, 128
      %v647 = vld [vmem:[%s646] sm:$0xf]
      %v648 = vld [vmem:[%s646 + $0x4] sm:$0xf]
      %v649 = vld [vmem:[%s646 + $0x8] sm:$0xf]
      %v650 = vld [vmem:[%s646 + $0xc] sm:$0xf]
      %v651 = vld [vmem:[%s646 + $0x10] sm:$0xf]
      %v652 = vld [vmem:[%s646 + $0x14] sm:$0xf]
      %v653 = vld [vmem:[%s646 + $0x18] sm:$0xf]
      %v654 = vld [vmem:[%s646 + $0x1c] sm:$0xf]
      %v655 = vld [vmem:[%s646 + $0x20] sm:$0xf]
      %v656 = vld [vmem:[%s646 + $0x24] sm:$0xf]
      %v657 = vld [vmem:[%s646 + $0x28] sm:$0xf]
      %v658 = vld [vmem:[%s646 + $0x2c] sm:$0xf]
      %v659 = vld [vmem:[%s646 + $0x30] sm:$0xf]
      %v660 = vld [vmem:[%s646 + $0x34] sm:$0xf]
      %v661 = vld [vmem:[%s646 + $0x38] sm:$0xf]
      %v662 = vld [vmem:[%s646 + $0x3c] sm:$0xf]
      %v664 = vunpack.c.l.b16 %v645
      %v665 = vpack.c.b16 %v448, %v664
      %vm666 = vcmask 1046528
      %v667 = vrot.slane %v665, 1
      %v668 = vrot.slane %v451, 1
      %v669 = vsel %vm666, %v667, %v668
      %v687 = vunpack.c.l.b16 %v647
      %v688 = vunpack.c.l.b16 %v648
      %v689 = vunpack.c.l.b16 %v649
      %v690 = vunpack.c.l.b16 %v650
      %v691 = vunpack.c.l.b16 %v651
      %v692 = vunpack.c.l.b16 %v652
      %v693 = vunpack.c.l.b16 %v653
      %v694 = vunpack.c.l.b16 %v654
      %v695 = vunpack.c.l.b16 %v655
      %v696 = vunpack.c.l.b16 %v656
      %v697 = vunpack.c.l.b16 %v657
      %v698 = vunpack.c.l.b16 %v658
      %v699 = vunpack.c.l.b16 %v659
      %v700 = vunpack.c.l.b16 %v660
      %v701 = vunpack.c.l.b16 %v661
      %v702 = vunpack.c.l.b16 %v662
      %v703 = vpack.c.b16 %v688, %v687
      %v704 = vpack.c.b16 %v690, %v689
      %v705 = vpack.c.b16 %v692, %v691
      %v706 = vpack.c.b16 %v694, %v693
      %v707 = vpack.c.b16 %v696, %v695
      %v708 = vpack.c.b16 %v698, %v697
      %v709 = vpack.c.b16 %v700, %v699
      %v710 = vpack.c.b16 %v702, %v701
      %719 = vmatprep.subr.bf16.mxu0 0
      %720 = vmatpush1.bf16.msra.mxu0 %v703
      %721 = vmatprep.subr.bf16.mxu0 0
      %722 = vmatpush1.bf16.msra.mxu0 %v704
      %723 = vmatprep.subr.bf16.mxu0 0
      %724 = vmatpush1.bf16.msra.mxu0 %v705
      %725 = vmatprep.subr.bf16.mxu0 0
      %726 = vmatpush1.bf16.msra.mxu0 %v706
      %727 = vmatprep.subr.bf16.mxu0 0
      %728 = vmatpush1.bf16.msra.mxu0 %v707
      %729 = vmatprep.subr.bf16.mxu0 0
      %730 = vmatpush1.bf16.msra.mxu0 %v708
      %731 = vmatprep.subr.bf16.mxu0 0
      %732 = vmatpush1.bf16.msra.mxu0 %v709
      %733 = vmatprep.subr.bf16.mxu0 0
      %734 = vmatpush1.bf16.msra.mxu0 %v710
      %735 = vmatprep.subr.bf16.mxu0 0
      %736 = vmatpush1.bf16.msra.mxu0 0
      %737 = vmatprep.subr.bf16.mxu0 0
      %738 = vmatpush1.bf16.msra.mxu0 0
      %739 = vmatprep.subr.bf16.mxu0 0
      %740 = vmatpush1.bf16.msra.mxu0 0
      %741 = vmatprep.subr.bf16.mxu0 0
      %742 = vmatpush1.bf16.msra.mxu0 0
      %743 = vmatprep.subr.bf16.mxu0 0
      %744 = vmatpush1.bf16.msra.mxu0 0
      %745 = vmatprep.subr.bf16.mxu0 0
      %746 = vmatpush1.bf16.msra.mxu0 0
      %747 = vmatprep.subr.bf16.mxu0 0
      %748 = vmatpush1.bf16.msra.mxu0 0
      %749 = vmatprep.subr.bf16.mxu0 0
      %750 = vmatpush1.bf16.msra.mxu0 0
      %751 = vmatprep.mubr.bf16.mxu0 0
      %752 = vmatmul.mubr.bf16.gmra.mrb[0].mxu0 %v669
      %v753 = vpop.f32.mrb[0].mxu0
      %v754 = vadd.f32 0.0, %v753
      %v755 = vpop.f32.mrb[0].mxu0
      %v756 = vpop.f32.mrb[0].mxu0
      %v757 = vadd.f32 0.0, %v756
      %v758 = vpop.f32.mrb[0].mxu0
      %759 = vdwg.mxu0
      %v760 = vadd.f32 %v639, %v754
      %v761 = vadd.f32 %v642, %v757
      %v762 = vld [vmem:[%s4] sm:$0x1]
      %v764 = vlaneseq
      %v765 = vshrl.u32 %v764, 7
      %v766 = vsub.s32 0, %v765
      %v767 = vrot.slane %v762, %v766
      %v769 = vadd.f32 %v760, %v767
      %v770 = vadd.f32 %v761, %v767
      %v771 = vsub.f32 0.0, %v769
      %v772 = vsub.f32 0.0, %v770
      %v773 = vmul.f32 %v771, 1.442695
      %v774 = vpow.pop %v773
      %v775 = vmul.f32 %v772, 1.442695
      %v776 = vpow.pop %v775
      %v777 = vadd.f32 %v774, 1.0
      %v778 = vadd.f32 %v776, 1.0
      %v779 = vrcp.pop %v777
      %v780 = vrcp.pop %v778
      %v781 = vmul.f32 %v769, %v779
      %v782 = vmul.f32 %v770, %v780
      %v783 = vadd.f32 %v357, %v781
      %v784 = vadd.f32 %v359, %v782
      %785 = vst [vmem:[%s224] sm:$0xff] %v783
      %786 = vst [vmem:[%s224 + $0x8] sm:$0xff] %v784
      %p787 = scmp.lt.s32.totalorder %s16, 1
      %s788 = scalar_select %p787, %s16, 1
      %s789 = smul.addr %s788, 2
      %s790 = smul.addr %s789, 8
      %s791 = scalar_lea.vmem %s5, %s790
      // Predicated region
      $region41: #{bottleneck_forward.1} parent=39 // pred_check
        %p792 = pneg %p144
      $region42: #{bottleneck_forward.1} parent=39 // pred_check_branch
        %794 = sbr.rel (%p792) target = $region44
      $region43: #{bottleneck_forward.1} parent=39 // pred_region
        _
      $region44: #{bottleneck_forward.1} parent=39 // pred_fallthru
        _
    $region40: #{bottleneck_forward.1} parent=5 // pred_fallthru
      _
    %p795 = scmp.le.s32.totalorder 2, %s11
    // Predicated region
    $region45: #{bottleneck_forward.1} parent=5 // pred_check
      %p796 = pneg %p795
    $region46: #{bottleneck_forward.1} parent=5 // pred_check_branch
      %798 = sbr.rel (%p796) target = $region48
    $region47: #{bottleneck_forward.1} parent=5 // pred_region
      %s799 = ssub.s32 %s11, 2
      // Predicated region
      $region49: #{bottleneck_forward.1} parent=47 // pred_check
        %p800 = pneg %p150
      $region50: #{bottleneck_forward.1} parent=47 // pred_check_branch
        %802 = sbr.rel (%p800) target = $region52
      $region51: #{bottleneck_forward.1} parent=47 // pred_region
        %p803 = scmp.lt.s32.totalorder %s17, 1
        %s804 = scalar_select %p803, %s17, 1
        %s805 = smul.addr %s804, 2
        %s806 = smul.addr %s805, 8
        %s807 = scalar_lea.vmem %s5, %s806
      $region52: #{bottleneck_forward.1} parent=47 // pred_fallthru
        _
    $region48: #{bottleneck_forward.1} parent=5 // pred_fallthru
      _
  $region6: #{bottleneck_forward.1} parent=0 // loop_footer
    %s15 = sadd.s32 1, %s11
  $region7: #{bottleneck_forward.1} parent=0 // loop_footer_branch
    %10 = sbr.rel target = $region3
  $region8: #{bottleneck_forward.1} parent=0 // loop_exit
    _

</llo_original>
